<compile_context>
chip_gen: v6e
topology: v6e:2x2x1
jax: 0.10.0
libtpu: 0.0.40
codegen_flags: <defaults>
</compile_context>

<pallas_src>
import numpy as np
import jax
import jax.numpy as jnp
from jax.experimental import pallas as pl
from jax.experimental.pallas import tpu as pltpu


# ---------------------------------------------------------------------------
# Kernel: out = A @ X @ B as two full-block MXU matmuls.
# ---------------------------------------------------------------------------
def _make_kernel(kron_on_left: bool, out_is_int: bool):
    """Build the kernel body.

    kron_on_left=True : natural layout, A = kron(I_c, M_h) (bf16), B = M_w^T (f32).
    kron_on_left=False: lane-packed,    A = M_h (f32), B = kron(I_c, M_w^T) (bf16).
    The kron-side matmul runs bf16 -> f32 accumulate; the small-operator matmul
    runs in f32 and consumes the f32 intermediate directly.
    """
    def kernel(x_ref, a_ref, b_ref, o_ref):
        x = x_ref[...].astype(jnp.bfloat16)
        if kron_on_left:
            u = jnp.dot(a_ref[...], x, preferred_element_type=jnp.float32)    # H-side (bf16)
            y = jnp.dot(u, b_ref[...], preferred_element_type=jnp.float32)    # W-side (f32)
        else:
            u = jnp.dot(x, b_ref[...], preferred_element_type=jnp.float32)    # W-side (bf16)
            y = jnp.dot(a_ref[...], u, preferred_element_type=jnp.float32)    # H-side (f32)
        if out_is_int:
            y = jnp.round(y)            # avoid truncation bias for integer images
        o_ref[...] = y.astype(o_ref.dtype)
    return kernel


# ---------------------------------------------------------------------------
# Host-side operator construction (linear-algebra folding of resize + pad).
# ---------------------------------------------------------------------------
def _bilinear_matrix(src_size: int, dst_size: int) -> np.ndarray:
    """(dst,src) operator matching F.interpolate(mode='bilinear',
    align_corners=False, antialias=False) along one axis (downscale case)."""
    if dst_size == src_size:
        return np.eye(src_size, dtype=np.float32)
    scale = src_size / dst_size
    i = np.arange(dst_size, dtype=np.float64)
    s = np.maximum((i + 0.5) * scale - 0.5, 0.0)          # PyTorch clamps at 0
    i0 = np.minimum(np.floor(s).astype(np.int64), src_size - 1)
    i1 = np.minimum(i0 + 1, src_size - 1)
    w1 = (s - i0).astype(np.float32)
    A = np.zeros((dst_size, src_size), dtype=np.float32)
    rows = np.arange(dst_size)
    np.add.at(A, (rows, i0), 1.0 - w1)
    np.add.at(A, (rows, i1), w1)
    return A


def _replicate_pad_matrix(full_size: int, inner_size: int, pad_before: int) -> np.ndarray:
    """(full,inner) gather matrix implementing F.pad(..., 'replicate') on one axis."""
    k = np.clip(np.arange(full_size) - pad_before, 0, inner_size - 1)
    P = np.zeros((full_size, inner_size), dtype=np.float32)
    P[np.arange(full_size), k] = 1.0
    return P


# ---------------------------------------------------------------------------
# Blocking / VMEM policy.
# ---------------------------------------------------------------------------
def _sublane_tile(itemsize: int) -> int:
    return {4: 8, 2: 16, 1: 32}.get(itemsize, 8)


def _pick_blocking(C, H, W, itemsize, pack_lanes, slab_budget):
    """Channels-per-grid-step and image buffer count.

    Preference order: fits the slab budget with double buffering, >= 2 grid
    steps (megacore + DMA pipelining), bounded kron size / FLOP waste, largest
    slab.  Falls back to single-buffered image slabs if nothing fits.
    """
    sub = _sublane_tile(itemsize)
    kron_axis = W if pack_lanes else H

    def layout_ok(c):
        if c == C:                       # block == full array dims is always legal
            return True
        if pack_lanes:
            return (c * W) % 128 == 0    # lane dim of the block
        return (c * H) % sub == 0        # sublane dim of the block

    def need_bytes(c, nbuf):
        blk = c * H * W
        img = 2 * nbuf * blk * itemsize                  # in + out slabs
        kron = (c * kron_axis) ** 2 * 2                  # bf16, single-buffered
        small = (H * H if pack_lanes else W * W) * 4     # f32, single-buffered
        inter = blk * 10                                 # bf16 x + f32 u + f32 y
        return img + kron + small + inter

    cands = [c for c in range(1, C + 1) if C % c == 0 and layout_ok(c)]
    for nbuf in (2, 1):
        ok = [c for c in cands
              if need_bytes(c, nbuf) <= slab_budget
              and c * kron_axis <= max(512, kron_axis)]  # bound kron size / FLOP waste
        if ok:
            multi = [c for c in ok if C // c >= 2]       # prefer >= 2 grid steps
            return (max(multi) if multi else max(ok)), nbuf
    # Nothing fits cleanly: single-buffer the smallest legal block.
    return min(cands), 1


# ---------------------------------------------------------------------------
# Deterministic core: resize to (new_h,new_w), replicate-pad back to (H,W).
# ---------------------------------------------------------------------------
def squeeze_with_padding(image, new_h, new_w, pad_top, pad_left):
    C, H, W = image.shape
    itemsize = jnp.dtype(image.dtype).itemsize
    out_is_int = bool(jnp.issubdtype(jnp.dtype(image.dtype), jnp.integer))

    # Fold (replicate pad) o (bilinear resize) into one operator per axis.
    mh = _replicate_pad_matrix(H, new_h, pad_top) @ _bilinear_matrix(H, new_h)        # (H,H)
    mwt = (_replicate_pad_matrix(W, new_w, pad_left) @ _bilinear_matrix(W, new_w)).T  # (W,W) = M_w^T

    # Generation-aware VMEM policy (64 MiB/TC on v7x, 128 MiB on v5e/v6e).
    try:
        vmem_cap = int(getattr(pltpu.get_tpu_info(), "vmem_capacity_bytes", 64 << 20))
    except Exception:
        vmem_cap = 64 << 20
    slab_budget = vmem_cap // 3

    # Lane-packed layout when W would force narrow masked stores.
    pack_lanes = (W < 128) and (C >= 2)

    c_blk, nbuf = _pick_blocking(C, H, W, itemsize, pack_lanes, slab_budget)
    num_blocks = C // c_blk

    kron_axis = W if pack_lanes else H
    need = (2 * nbuf * c_blk * H * W * itemsize
            + (c_blk * kron_axis) ** 2 * 2
            + (H * H if pack_lanes else W * W) * 4
            + c_blk * H * W * 10)
    vmem_limit = int(min(max(need + (4 << 20), 16 << 20), vmem_cap - (16 << 20)))

    const_mode = pl.Buffered(1)          # operator matrices are grid-invariant
    img_mode = pl.Buffered(1) if nbuf == 1 else None

    if pack_lanes:
        # (H, C*W): channels packed onto the lane axis -> lane-dense stores.
        x2d = jnp.transpose(image, (1, 0, 2)).reshape(H, C * W)
        cols = c_blk * W
        a_dev = jnp.asarray(mh, dtype=jnp.float32)                                   # (H,H)
        b_dev = jnp.asarray(np.kron(np.eye(c_blk, dtype=np.float32), mwt),
                            dtype=jnp.bfloat16)                                      # (cols,cols)
        img_shape, img_map = (H, cols), (lambda i: (0, i))
        a_spec = pl.BlockSpec((H, H), lambda i: (0, 0), pipeline_mode=const_mode)
        b_spec = pl.BlockSpec((cols, cols), lambda i: (0, 0), pipeline_mode=const_mode)
        out_shape = jax.ShapeDtypeStruct((H, C * W), image.dtype)
        kron_on_left = False
    else:
        # (C*H, W): natural layout; H-side batched with a block-diagonal kron.
        x2d = image.reshape(C * H, W)
        rows = c_blk * H
        a_dev = jnp.asarray(np.kron(np.eye(c_blk, dtype=np.float32), mh),
                            dtype=jnp.bfloat16)                                      # (rows,rows)
        b_dev = jnp.asarray(mwt, dtype=jnp.float32)                                  # (W,W)
        img_shape, img_map = (rows, W), (lambda i: (i, 0))
        a_spec = pl.BlockSpec((rows, rows), lambda i: (0, 0), pipeline_mode=const_mode)
        b_spec = pl.BlockSpec((W, W), lambda i: (0, 0), pipeline_mode=const_mode)
        out_shape = jax.ShapeDtypeStruct((C * H, W), image.dtype)
        kron_on_left = True

    def img_spec():
        if img_mode is None:
            return pl.BlockSpec(img_shape, img_map)
        return pl.BlockSpec(img_shape, img_map, pipeline_mode=img_mode)

    out2d = pl.pallas_call(
        _make_kernel(kron_on_left, out_is_int),
        out_shape=out_shape,
        grid=(num_blocks,),
        in_specs=[img_spec(), a_spec, b_spec],
        out_specs=img_spec(),
        compiler_params=pltpu.CompilerParams(
            dimension_semantics=("parallel",),
            vmem_limit_bytes=vmem_limit,
        ),
    )(x2d, a_dev, b_dev)

    if pack_lanes:
        return out2d.reshape(H, C, W).transpose(1, 0, 2)
    return out2d.reshape(C, H, W)


# ---------------------------------------------------------------------------
# Random wrapper (module-equivalent forward; randomness drawn on the host).
# ---------------------------------------------------------------------------
def random_squeeze_with_padding(image,
                                rng: np.random.Generator,
                                vertical_scale_range=(0.5, 1.0),
                                horizontal_scale_range=(0.5, 1.0),
                                pad_value=0):
    """JAX/Pallas port of RandomSqueezeWithPadding.forward.

    Host randomness (python `random` / `torch.rand` in the original) comes from
    the supplied numpy Generator — no blocking device->host syncs.
    `pad_value` is kept for API parity but unused (the module replicate-pads).
    """
    C, H, W = image.shape
    new_h, new_w = H, W
    if vertical_scale_range is not None:
        new_h = max(1, int(H * rng.uniform(*vertical_scale_range)))
    if horizontal_scale_range is not None:
        new_w = max(1, int(W * rng.uniform(*horizontal_scale_range)))
    pad_top = int((H - new_h) * rng.uniform())
    pad_left = int((W - new_w) * rng.uniform())
    return squeeze_with_padding(image, new_h, new_w, pad_top, pad_left)


if __name__ == "__main__":
    key = jax.random.PRNGKey(0)
    C, H, W = 4, 16, 16
    image = jax.random.normal(key, (C, H, W), dtype=jnp.float32)

    # 1) Deterministic core vs. a numpy reference of the folded linear operator.
    new_h, new_w, pad_top, pad_left = 11, 9, 3, 4
    out = jax.block_until_ready(
        squeeze_with_padding(image, new_h, new_w, pad_top, pad_left))
    assert out.shape == (C, H, W) and out.dtype == image.dtype

    mh_ref = _replicate_pad_matrix(H, new_h, pad_top) @ _bilinear_matrix(H, new_h)
    mw_ref = _replicate_pad_matrix(W, new_w, pad_left) @ _bilinear_matrix(W, new_w)
    ref = np.einsum("hk,ckj,wj->chw", mh_ref,
                    np.asarray(image, dtype=np.float32), mw_ref)
    err = float(np.max(np.abs(np.asarray(out, dtype=np.float32) - ref)))
    assert np.allclose(np.asarray(out, dtype=np.float32), ref, atol=0.1, rtol=0.05), err

    # 2) Random wrapper, as the module's forward would be used.
    rng = np.random.default_rng(0)   # host randomness, like random / torch.rand
    out2 = jax.block_until_ready(random_squeeze_with_padding(image, rng))
    assert out2.shape == (C, H, W) and out2.dtype == image.dtype
    assert bool(jnp.all(jnp.isfinite(out2)))

    print("KERNEL_OK")
</pallas_src>

<mosaic_0001>
module attributes {stable_mosaic.version = 11 : i64} {
  func.func @kernel(%arg0: i32, %arg1: memref<16x64xf32, #tpu.memory_space<vmem>>, %arg2: memref<16x16xf32, #tpu.memory_space<vmem>>, %arg3: memref<64x64xbf16, #tpu.memory_space<vmem>>, %arg4: memref<16x64xf32, #tpu.memory_space<vmem>>) attributes {dimension_semantics = [#tpu.dimension_semantics<parallel>], iteration_bounds = array<i64: 1>, scalar_prefetch = 0 : i64, scratch_operands = 0 : i64, tpu.core_type = #tpu.core_type<tc>, window_params = [{transform_indices = @transform_0, window_bounds = array<i64: 16, 64>}, {pipeline_mode = #tpu.pipeline_mode<synchronous>, transform_indices = @transform_1, window_bounds = array<i64: 16, 16>}, {pipeline_mode = #tpu.pipeline_mode<synchronous>, transform_indices = @transform_2, window_bounds = array<i64: 64, 64>}, {transform_indices = @transform_3, window_bounds = array<i64: 16, 64>}]} {
    %c0 = arith.constant 0 : index
    %c0_0 = arith.constant 0 : index
    %0 = vector.load %arg1[%c0, %c0_0] : memref<16x64xf32, #tpu.memory_space<vmem>>, vector<16x64xf32>
    %1 = arith.truncf %0 : vector<16x64xf32> to vector<16x64xbf16>
    %c0_1 = arith.constant 0 : index
    %c0_2 = arith.constant 0 : index
    %2 = vector.load %arg3[%c0_1, %c0_2] : memref<64x64xbf16, #tpu.memory_space<vmem>>, vector<64x64xbf16>
    %cst = arith.constant dense<0.000000e+00> : vector<16x64xf32>
    %3 = tpu.matmul %1, %2, %cst {dimension_numbers = #tpu.dot_dimension_numbers<[1], [0], [0], [1], [0, 0, 1, 1], [], []>} : vector<16x64xbf16>, vector<64x64xbf16>, vector<16x64xf32> -> vector<16x64xf32>
    %c0_3 = arith.constant 0 : index
    %c0_4 = arith.constant 0 : index
    %4 = vector.load %arg2[%c0_3, %c0_4] : memref<16x16xf32, #tpu.memory_space<vmem>>, vector<16x16xf32>
    %cst_5 = arith.constant dense<0.000000e+00> : vector<16x64xf32>
    %5 = tpu.matmul %4, %3, %cst_5 {dimension_numbers = #tpu.dot_dimension_numbers<[1], [0], [0], [1], [0, 0, 1, 1], [], []>} : vector<16x16xf32>, vector<16x64xf32>, vector<16x64xf32> -> vector<16x64xf32>
    %c0_6 = arith.constant 0 : index
    %c0_7 = arith.constant 0 : index
    %6 = vector.load %arg4[%c0_6, %c0_7] : memref<16x64xf32, #tpu.memory_space<vmem>>, vector<16x64xf32>
    tpu.vector_store %arg4[%c0_6, %c0_7], %5 {strides = array<i32>} : memref<16x64xf32, #tpu.memory_space<vmem>>, vector<16x64xf32>,
    return
  }
  func.func @transform_0(%arg0: i32) -> (i32, i32) {
    %c0_i32 = arith.constant 0 : i32
    %c0_i32_0 = arith.constant 0 : i32
    return %c0_i32, %arg0 : i32, i32
  }
  func.func @transform_1(%arg0: i32) -> (i32, i32) {
    %c0_i32 = arith.constant 0 : i32
    %c0_i32_0 = arith.constant 0 : i32
    %c0_i32_1 = arith.constant 0 : i32
    return %c0_i32, %c0_i32_0 : i32, i32
  }
  func.func @transform_2(%arg0: i32) -> (i32, i32) {
    %c0_i32 = arith.constant 0 : i32
    %c0_i32_0 = arith.constant 0 : i32
    %c0_i32_1 = arith.constant 0 : i32
    return %c0_i32, %c0_i32_0 : i32, i32
  }
  func.func @transform_3(%arg0: i32) -> (i32, i32) {
    %c0_i32 = arith.constant 0 : i32
    %c0_i32_0 = arith.constant 0 : i32
    return %c0_i32, %arg0 : i32, i32
  }
}

</mosaic_0001>

<llo_original>
// kernel: tpu_custom_call.1
$region0: #{tpu_custom_call.1}
  #allocation0 [shape = 'u32[]', space=smem, size = 0x4, offset = 0x4, fixed_abs, tag = 'smem constant byte address 0x4 - core index']
  #allocation1 [shape = 'u32[144,128]{1,0:T(1,128)}', space=vmem, size = 0x12000, scoped, tag = 'internal scratch']
  %s0 = inlined_call_operand.hbm [shape: f32[16,64], index: 0, kind: input, shape index: {}]
  %s1 = inlined_call_operand.hbm [shape: f32[16,16], index: 1, kind: input, shape index: {}]
  %s2 = inlined_call_operand.hbm [shape: bf16[64,64], index: 2, kind: input, shape index: {}]
  %s3 = inlined_call_operand.hbm [shape: f32[16,64], index: 3, kind: output, shape index: {}]
  %s4 = sld [smem:[#allocation0]]
  $region34: #{tpu_custom_call.1} parent=0
    _
  %s6 = ssub.s32 1, %s4
  %s7 = scalar_select 0, %s6, %s4
  $region1: #{tpu_custom_call.1} parent=0
    #allocation2 [shape = 'u8[8192]{0}', space=vmem, size = 0x2000, scoped, tag = 'input window, operand 0, single buffered']
    #allocation3 [shape = 's32[1]{0}', space=sflag, size = 0x4, scoped, tag = 'scoped memory for tpu_custom_call.1']
    #allocation4 [shape = 's32[1]{0}', space=sflag, size = 0x4, scoped, tag = 'scoped memory for tpu_custom_call.1']
    #allocation5 [shape = 'u8[8192]{0}', space=vmem, size = 0x2000, scoped, tag = 'input window, operand 1, single buffered']
    #allocation6 [shape = 's32[1]{0}', space=sflag, size = 0x4, scoped, tag = 'scoped memory for tpu_custom_call.1']
    #allocation7 [shape = 'u8[16384]{0}', space=vmem, size = 0x4000, scoped, tag = 'input window, operand 2, single buffered']
    #allocation8 [shape = 'u8[8192]{0}', space=vmem, size = 0x2000, scoped, tag = 'output window, operand 0, single buffered']
    %8 = vsyncpa [#allocation3], 0
    %9 = vsyncpa [#allocation6], 0
    %10 = vsyncpa [#allocation4], 0
    // Predicated region
    $region2: #{tpu_custom_call.1} parent=1 // pred_check
      _
    $region3: #{tpu_custom_call.1} parent=1 // pred_check_branch
      %12 = sbr.rel (0) target = $region5
    $region4: #{tpu_custom_call.1} parent=1 // pred_region
      %s14 = ssub.s32 256, 256
      %15 = vsyncadd [#allocation3], %s14
      %s16 = sshll.u32 [#allocation2], 4
      %s17 = int_to_ptr.vmem [resolvable:$true] %s16
      %22 = dma.hbm_to_vmem [thread:$0]  %s0, 256, %s17, [#allocation3], 128, 128, 8
    $region5: #{tpu_custom_call.1} parent=1 // pred_fallthru
      _
    // Predicated region
    $region6: #{tpu_custom_call.1} parent=1 // pred_check
      _
    $region7: #{tpu_custom_call.1} parent=1 // pred_check_branch
      %24 = sbr.rel (0) target = $region9
    $region8: #{tpu_custom_call.1} parent=1 // pred_region
      %s26 = ssub.s32 256, 256
      %27 = vsyncadd [#allocation6], %s26
      %s28 = sshll.u32 [#allocation5], 4
      %s29 = int_to_ptr.vmem [resolvable:$true] %s28
      %34 = dma.hbm_to_vmem [thread:$0]  %s1, 256, %s29, [#allocation6], 128, 128, 8
    $region9: #{tpu_custom_call.1} parent=1 // pred_fallthru
      _
    // Predicated region
    $region10: #{tpu_custom_call.1} parent=1 // pred_check
      _
    $region11: #{tpu_custom_call.1} parent=1 // pred_check_branch
      %36 = sbr.rel (0) target = $region13
    $region12: #{tpu_custom_call.1} parent=1 // pred_region
      %s38 = ssub.s32 512, 512
      %39 = vsyncadd [#allocation6], %s38
      %s40 = sshll.u32 [#allocation7], 4
      %s41 = int_to_ptr.vmem [resolvable:$true] %s40
      %46 = dma.hbm_to_vmem [thread:$0]  %s2, 512, %s41, [#allocation6], 64, 64, 4
    $region13: #{tpu_custom_call.1} parent=1 // pred_fallthru
      _
    // Predicated region
    $region14: #{tpu_custom_call.1} parent=1 // pred_check
      _
    $region15: #{tpu_custom_call.1} parent=1 // pred_check_branch
      %48 = sbr.rel (0) target = $region17
    $region16: #{tpu_custom_call.1} parent=1 // pred_region
      %49 = dma.done [#allocation3], 256
    $region17: #{tpu_custom_call.1} parent=1 // pred_fallthru
      _
    // Predicated region
    $region18: #{tpu_custom_call.1} parent=1 // pred_check
      _
    $region19: #{tpu_custom_call.1} parent=1 // pred_check_branch
      %51 = sbr.rel (0) target = $region21
    $region20: #{tpu_custom_call.1} parent=1 // pred_region
      %52 = dma.done [#allocation6], 256
    $region21: #{tpu_custom_call.1} parent=1 // pred_fallthru
      _
    // Predicated region
    $region22: #{tpu_custom_call.1} parent=1 // pred_check
      _
    $region23: #{tpu_custom_call.1} parent=1 // pred_check_branch
      %54 = sbr.rel (0) target = $region25
    $region24: #{tpu_custom_call.1} parent=1 // pred_region
      %55 = dma.done [#allocation6], 512
    $region25: #{tpu_custom_call.1} parent=1 // pred_fallthru
      _
    %v57 = vld [vmem:[#allocation2] sm:$0xff]
    %v58 = vld [vmem:[#allocation2 + $0x8] sm:$0xff]
    %v59 = vpack.c.bf16 %v58, %v57
    %v60 = vld [vmem:[#allocation7] sm:$0xf]
    %v61 = vld [vmem:[#allocation7 + $0x4] sm:$0xf]
    %v62 = vld [vmem:[#allocation7 + $0x8] sm:$0xf]
    %v63 = vld [vmem:[#allocation7 + $0xc] sm:$0xf]
    %v64 = vld [vmem:[#allocation7 + $0x10] sm:$0xf]
    %v65 = vld [vmem:[#allocation7 + $0x14] sm:$0xf]
    %v66 = vld [vmem:[#allocation7 + $0x18] sm:$0xf]
    %v67 = vld [vmem:[#allocation7 + $0x1c] sm:$0xf]
    %v76 = vunpack.c.l.b16 %v60
    %v77 = vunpack.c.l.b16 %v61
    %v78 = vunpack.c.l.b16 %v62
    %v79 = vunpack.c.l.b16 %v63
    %v80 = vunpack.c.l.b16 %v64
    %v81 = vunpack.c.l.b16 %v65
    %v82 = vunpack.c.l.b16 %v66
    %v83 = vunpack.c.l.b16 %v67
    %v84 = vpack.c.b16 %v77, %v76
    %v85 = vpack.c.b16 %v79, %v78
    %v86 = vpack.c.b16 %v81, %v80
    %v87 = vpack.c.b16 %v83, %v82
    %vm92 = vcmask 523264
    %v94 = vsel %vm92, %v59, 0
    %96 = vmatprep.subr.bf16.mxu0 0
    %97 = vmatpush1.bf16.msra.mxu0 0
    %98 = vmatprep.subr.bf16.mxu0 0
    %99 = vmatpush1.bf16.msra.mxu0 0
    %100 = vmatprep.subr.bf16.mxu0 0
    %101 = vmatpush1.bf16.msra.mxu0 0
    %102 = vmatprep.subr.bf16.mxu0 0
    %103 = vmatpush1.bf16.msra.mxu0 0
    %104 = vmatprep.subr.bf16.mxu0 0
    %105 = vmatpush1.bf16.msra.mxu0 %v87
    %106 = vmatprep.subr.bf16.mxu0 0
    %107 = vmatpush1.bf16.msra.mxu0 %v86
    %108 = vmatprep.subr.bf16.mxu0 0
    %109 = vmatpush1.bf16.msra.mxu0 %v85
    %110 = vmatprep.subr.bf16.mxu0 0
    %111 = vmatpush1.bf16.msra.mxu0 %v84
    %112 = vmatprep.subr.bf16.mxu0 0
    %113 = vmatpush2.bf16.msra.mxu0 0
    %114 = vmatprep.subr.bf16.mxu0 0
    %115 = vmatpush2.bf16.msra.mxu0 0
    %116 = vmatprep.subr.bf16.mxu0 0
    %117 = vmatpush2.bf16.msra.mxu0 0
    %118 = vmatprep.subr.bf16.mxu0 0
    %119 = vmatpush2.bf16.msra.mxu0 0
    %120 = vmatprep.subr.bf16.mxu0 0
    %121 = vmatpush2.bf16.msra.mxu0 0
    %122 = vmatprep.subr.bf16.mxu0 0
    %123 = vmatpush2.bf16.msra.mxu0 0
    %124 = vmatprep.subr.bf16.mxu0 0
    %125 = vmatpush2.bf16.msra.mxu0 0
    %126 = vmatprep.subr.bf16.mxu0 0
    %127 = vmatpush2.bf16.msra.mxu0 0
    %128 = vmatprep.mubr.bf16.mxu0 0
    %129 = vmatmul.mubr.bf16.gmra.mxu0 %v94
    %v130 = vpop.f32.mrf.mxu0
    %v131 = vadd.f32 0.0, %v130
    %v132 = vpop.f32.mrf.mxu0
    %v133 = vpop.f32.mrf.mxu0
    %v134 = vadd.f32 0.0, %v133
    %v135 = vpop.f32.mrf.mxu0
    %136 = vdwg.mxu0
    %v137 = vld [vmem:[#allocation5] sm:$0xff]
    %v138 = vld [vmem:[#allocation5 + $0x8] sm:$0xff]
    %vm139 = vcmask 130048
    %v141 = vsel %vm139, %v137, 0
    %v144 = vsel %vm139, %v138, 0
    %146 = vmatprep.subr.mxu0 0.0
    %147 = vmatpush1.msra.mxu0 0.0
    %148 = vmatprep.subr.mxu0 0.0
    %149 = vmatpush1.msra.mxu0 0.0
    %150 = vmatprep.subr.mxu0 0.0
    %151 = vmatpush1.msra.mxu0 0.0
    %152 = vmatprep.subr.mxu0 0.0
    %153 = vmatpush1.msra.mxu0 0.0
    %154 = vmatprep.subr.mxu0 0.0
    %155 = vmatpush1.msra.mxu0 0.0
    %156 = vmatprep.subr.mxu0 0.0
    %157 = vmatpush1.msra.mxu0 0.0
    %158 = vmatprep.subr.mxu0 0.0
    %159 = vmatpush1.msra.mxu0 0.0
    %160 = vmatprep.subr.mxu0 0.0
    %161 = vmatpush1.msra.mxu0 0.0
    %162 = vmatprep.subr.mxu0 0.0
    %163 = vmatpush1.msra.mxu0 0.0
    %164 = vmatprep.subr.mxu0 0.0
    %165 = vmatpush1.msra.mxu0 0.0
    %166 = vmatprep.subr.mxu0 0.0
    %167 = vmatpush1.msra.mxu0 0.0
    %168 = vmatprep.subr.mxu0 0.0
    %169 = vmatpush1.msra.mxu0 0.0
    %170 = vmatprep.subr.mxu0 0.0
    %171 = vmatpush1.msra.mxu0 0.0
    %172 = vmatprep.subr.mxu0 0.0
    %173 = vmatpush1.msra.mxu0 0.0
    %174 = vmatprep.subr.mxu0 0.0
    %175 = vmatpush1.msra.mxu0 %v134
    %176 = vmatprep.subr.mxu0 0.0
    %177 = vmatpush1.msra.mxu0 %v131
    %178 = vmatprep.subr.mxu0 0.0
    %179 = vmatpush2.msra.mxu0 0.0
    %180 = vmatprep.subr.mxu0 0.0
    %181 = vmatpush2.msra.mxu0 0.0
    %182 = vmatprep.subr.mxu0 0.0
    %183 = vmatpush2.msra.mxu0 0.0
    %184 = vmatprep.subr.mxu0 0.0
    %185 = vmatpush2.msra.mxu0 0.0
    %186 = vmatprep.subr.mxu0 0.0
    %187 = vmatpush2.msra.mxu0 0.0
    %188 = vmatprep.subr.mxu0 0.0
    %189 = vmatpush2.msra.mxu0 0.0
    %190 = vmatprep.subr.mxu0 0.0
    %191 = vmatpush2.msra.mxu0 0.0
    %192 = vmatprep.subr.mxu0 0.0
    %193 = vmatpush2.msra.mxu0 0.0
    %194 = vmatprep.subr.mxu0 0.0
    %195 = vmatpush2.msra.mxu0 0.0
    %196 = vmatprep.subr.mxu0 0.0
    %197 = vmatpush2.msra.mxu0 0.0
    %198 = vmatprep.subr.mxu0 0.0
    %199 = vmatpush2.msra.mxu0 0.0
    %200 = vmatprep.subr.mxu0 0.0
    %201 = vmatpush2.msra.mxu0 0.0
    %202 = vmatprep.subr.mxu0 0.0
    %203 = vmatpush2.msra.mxu0 0.0
    %204 = vmatprep.subr.mxu0 0.0
    %205 = vmatpush2.msra.mxu0 0.0
    %206 = vmatprep.subr.mxu0 0.0
    %207 = vmatpush2.msra.mxu0 0.0
    %208 = vmatprep.subr.mxu0 0.0
    %209 = vmatpush2.msra.mxu0 0.0
    %210 = vmatprep.mubr.f32.mxu0 0.0
    %211 = vmatmul.mubr.f32.gmra.mxu0 %v141
    %v212 = vpop.f32.mrf.mxu0
    %v213 = vadd.f32 0.0, %v212
    %v214 = vpop.f32.mrf.mxu0
    %215 = vmatprep.mubr.f32.mxu0 0.0
    %216 = vmatmul.mubr.f32.gmra.mxu0 %v144
    %v217 = vpop.f32.mrf.mxu0
    %v218 = vadd.f32 0.0, %v217
    %v219 = vpop.f32.mrf.mxu0
    %220 = vdwg.mxu0
    %221 = vst.msk [vmem:[#allocation8] sm:$0xff] %vm92, %v213
    %222 = vst.msk [vmem:[#allocation8 + $0x8] sm:$0xff] %vm92, %v218
    // Predicated region
    $region26: #{tpu_custom_call.1} parent=1 // pred_check
      _
    $region27: #{tpu_custom_call.1} parent=1 // pred_check_branch
      %224 = sbr.rel (0) target = $region29
    $region28: #{tpu_custom_call.1} parent=1 // pred_region
      %s226 = ssub.s32 256, 256
      %227 = vsyncadd [#allocation4], %s226
      %s228 = sshll.u32 [#allocation8], 4
      %s229 = int_to_ptr.vmem [resolvable:$true] %s228
      %234 = dma.vmem_to_hbm [thread:$0]  %s229, 256, %s3, [#allocation4], 128, 128, 8
    $region29: #{tpu_custom_call.1} parent=1 // pred_fallthru
      _
    // Predicated region
    $region30: #{tpu_custom_call.1} parent=1 // pred_check
      _
    $region31: #{tpu_custom_call.1} parent=1 // pred_check_branch
      %236 = sbr.rel (0) target = $region33
    $region32: #{tpu_custom_call.1} parent=1 // pred_region
      %237 = dma.done [#allocation4], 256
    $region33: #{tpu_custom_call.1} parent=1 // pred_fallthru
      _
    %238 = vsyncpa [#allocation3], 1
    %239 = vsyncpa [#allocation6], 1
    %240 = vsyncpa [#allocation4], 1

</llo_original>
